<compile_context>
chip_gen: v7x
topology: tpu7x:2x2x1
jax: 0.10.0
libtpu: 0.0.40
codegen_flags: <defaults>
</compile_context>

<pallas_src>
import jax
import jax.numpy as jnp
from jax import lax
from jax.experimental import pallas as pl
from jax.experimental.pallas import tpu as pltpu


def _linear_kernel(x_ref, w_ref, b_ref, o_ref):
    # x_ref: (tile_b, E)  VMEM, walks the batch (double-buffered)
    # w_ref: (L, E)       VMEM, PyTorch layout, constant (single-buffered)
    # b_ref: (1, L)       VMEM, f32, constant (single-buffered)
    # o_ref: (tile_b, L)  VMEM
    acc = lax.dot_general(
        x_ref[...], w_ref[...],
        dimension_numbers=(((1,), (1,)), ((), ())),   # contract on E for both
        preferred_element_type=jnp.float32,
    )
    o_ref[...] = (acc + b_ref[...]).astype(o_ref.dtype)


def _round_up(v, m):
    return -(-v // m) * m


def _sublane(dtype):
    # Packed dtypes stack along sublanes: 8 rows for 4-byte, 16 for 2-byte,
    # 32 for 1-byte element types.
    return max(8, 32 // jnp.dtype(dtype).itemsize)


def discriminator_forward(x, weight, bias, *, tile_b=1024,
                          vmem_budget_bytes=48 << 20):
    """x: (B, E); weight: (L, E) (PyTorch layout); bias: (L,) -> (B, L)."""
    B, E = x.shape
    L, E_w = weight.shape
    assert E == E_w, "weight must be (n_languages, embedding_size)"
    # Bias is added to the f32 accumulator; keep it f32 even on the bf16 path.
    b2 = bias.reshape(1, L).astype(jnp.float32)

    sub = _sublane(x.dtype)
    x_bytes = jnp.dtype(x.dtype).itemsize
    w_bytes = jnp.dtype(weight.dtype).itemsize

    # --- batch-tile selection ---------------------------------------------
    # 1) As large as requested (mem-bound kernel), but never beyond B.
    tile_b = min(tile_b, B)

    # 2) v7x has 2 TensorCores: give the ("parallel",) batch grid >= 2 steps
    #    whenever the batch is splittable (free on the single-core gens).
    if B > sub:
        tile_b = min(tile_b, _round_up(pl.cdiv(B, 2), sub))

    # 3) Clamp the working set to the VMEM budget (sized for v7x's 64 MiB
    #    physical VMEM with headroom) so double-buffering of x / out survives.
    def _vmem_need(tb):
        return (
            2 * tb * _round_up(E, 128) * x_bytes                   # x, double-buffered
            + 1 * _round_up(L, 8) * _round_up(E, 128) * w_bytes    # weight, single-buffered
            + 1 * 8 * _round_up(L, 128) * 4                        # bias (f32), single-buffered
            + 2 * tb * _round_up(L, 128) * x_bytes                 # out, double-buffered
        )

    while tile_b > sub and _vmem_need(tile_b) > vmem_budget_bytes:
        tile_b = max(sub, _round_up(tile_b // 2, sub))

    # 4) dtype-correct sublane alignment for partial-batch tiles.
    if tile_b < B:
        tile_b = max(sub, (tile_b // sub) * sub)
    grid_b = pl.cdiv(B, tile_b)

    vmem_limit = max(int(_vmem_need(tile_b)) + (4 << 20), 32 << 20)

    cost = pl.CostEstimate(
        flops=2 * B * E * L,
        transcendentals=0,
        bytes_accessed=(B * E * x_bytes + L * E * w_bytes
                        + B * L * x_bytes + L * 4),
    )

    return pl.pallas_call(
        _linear_kernel,
        out_shape=jax.ShapeDtypeStruct((B, L), x.dtype),
        grid_spec=pltpu.PrefetchScalarGridSpec(
            num_scalar_prefetch=0,
            grid=(grid_b,),
            in_specs=[
                # x tile walks the batch (default double-buffering).
                pl.BlockSpec((tile_b, E), lambda i: (i, 0)),
                # Constant-index weight / bias: single-buffered to halve their
                # VMEM footprint (same block every grid step, no prefetch win).
                pl.BlockSpec((L, E), lambda i: (0, 0),
                             pipeline_mode=pl.Buffered(1)),
                pl.BlockSpec((1, L), lambda i: (0, 0),
                             pipeline_mode=pl.Buffered(1)),
            ],
            out_specs=pl.BlockSpec((tile_b, L), lambda i: (i, 0)),
        ),
        compiler_params=pltpu.CompilerParams(
            dimension_semantics=("parallel",),
            vmem_limit_bytes=vmem_limit,
        ),
        cost_estimate=cost,
    )(x, weight, b2)


if __name__ == "__main__":
    key = jax.random.PRNGKey(0)
    k_x, k_w, k_b, k_x2, k_w2, k_b2 = jax.random.split(key, 6)

    # --- small demo shapes consistent with the module -----------------------
    embedding_size, n_languages, batch = 32, 4, 8
    bound = 1.0 / (embedding_size ** 0.5)
    weight = jax.random.uniform(k_w, (n_languages, embedding_size),
                                minval=-bound, maxval=bound, dtype=jnp.float32)
    bias = jax.random.uniform(k_b, (n_languages,),
                              minval=-bound, maxval=bound, dtype=jnp.float32)
    x = jax.random.normal(k_x, (batch, embedding_size), dtype=jnp.float32)

    out = jax.block_until_ready(discriminator_forward(x, weight, bias))
    ref = x @ weight.T + bias
    assert out.shape == (batch, n_languages)
    assert jnp.allclose(out, ref, atol=1e-5, rtol=1e-5)

    # --- multi-step grid / ragged tail / 2-TC split path (f32) --------------
    B2, E2, L2 = 1000, 256, 16
    bound2 = 1.0 / (E2 ** 0.5)
    w2 = jax.random.uniform(k_w2, (L2, E2), minval=-bound2, maxval=bound2,
                            dtype=jnp.float32)
    bias2 = jax.random.uniform(k_b2, (L2,), minval=-bound2, maxval=bound2,
                               dtype=jnp.float32)
    x2 = jax.random.normal(k_x2, (B2, E2), dtype=jnp.float32)

    out2 = jax.block_until_ready(discriminator_forward(x2, w2, bias2))
    ref2 = jnp.dot(x2, w2.T, precision=lax.Precision.HIGHEST) + bias2
    # Tolerance only absorbs MXU f32 pass-decomposition differences vs. the
    # XLA reference; tiling/indexing bugs would show up as O(1) errors.
    assert out2.shape == (B2, L2)
    assert jnp.allclose(out2, ref2, atol=2e-2, rtol=2e-2)

    # --- bf16 fast path (biggest lever on v5e's HBM bandwidth) --------------
    out_bf = jax.block_until_ready(
        discriminator_forward(x2.astype(jnp.bfloat16),
                              w2.astype(jnp.bfloat16),
                              bias2.astype(jnp.bfloat16)))
    ref_bf = (jnp.dot(x2.astype(jnp.bfloat16).astype(jnp.float32),
                      w2.astype(jnp.bfloat16).astype(jnp.float32).T,
                      precision=lax.Precision.HIGHEST)
              + bias2.astype(jnp.bfloat16).astype(jnp.float32))
    assert out_bf.dtype == jnp.bfloat16
    assert jnp.allclose(out_bf.astype(jnp.float32), ref_bf, atol=3e-2, rtol=3e-2)

    print("KERNEL_OK")
</pallas_src>

<mosaic_0001>
module attributes {stable_mosaic.version = 11 : i64} {
  func.func @_linear_kernel(%arg0: i32, %arg1: memref<8x32xf32, #tpu.memory_space<vmem>>, %arg2: memref<4x32xf32, #tpu.memory_space<vmem>>, %arg3: memref<1x4xf32, #tpu.memory_space<vmem>>, %arg4: memref<8x4xf32, #tpu.memory_space<vmem>>) attributes {dimension_semantics = [#tpu.dimension_semantics<parallel>], iteration_bounds = array<i64: 1>, scalar_prefetch = 0 : i64, scratch_operands = 0 : i64, tpu.core_type = #tpu.core_type<tc>, window_params = [{transform_indices = @transform_0, window_bounds = array<i64: 8, 32>}, {pipeline_mode = #tpu.pipeline_mode<synchronous>, transform_indices = @transform_1, window_bounds = array<i64: 4, 32>}, {pipeline_mode = #tpu.pipeline_mode<synchronous>, transform_indices = @transform_2, window_bounds = array<i64: 1, 4>}, {transform_indices = @transform_3, window_bounds = array<i64: 8, 4>}]} {
    %c0 = arith.constant 0 : index
    %c0_0 = arith.constant 0 : index
    %0 = vector.load %arg1[%c0, %c0_0] : memref<8x32xf32, #tpu.memory_space<vmem>>, vector<8x32xf32>
    %c0_1 = arith.constant 0 : index
    %c0_2 = arith.constant 0 : index
    %1 = vector.load %arg2[%c0_1, %c0_2] : memref<4x32xf32, #tpu.memory_space<vmem>>, vector<4x32xf32>
    %cst = arith.constant dense<0.000000e+00> : vector<8x4xf32>
    %2 = tpu.matmul %0, %1, %cst {dimension_numbers = #tpu.dot_dimension_numbers<[1], [1], [0], [0], [0, 0, 1, 0], [], []>} : vector<8x32xf32>, vector<4x32xf32>, vector<8x4xf32> -> vector<8x4xf32>
    %c0_3 = arith.constant 0 : index
    %c0_4 = arith.constant 0 : index
    %3 = vector.load %arg3[%c0_3, %c0_4] : memref<1x4xf32, #tpu.memory_space<vmem>>, vector<1x4xf32>
    %4 = vector.broadcast %3 : vector<1x4xf32> to vector<8x4xf32>
    %5 = arith.addf %2, %4 : vector<8x4xf32>
    %c0_5 = arith.constant 0 : index
    %c0_6 = arith.constant 0 : index
    %6 = vector.load %arg4[%c0_5, %c0_6] : memref<8x4xf32, #tpu.memory_space<vmem>>, vector<8x4xf32>
    tpu.vector_store %arg4[%c0_5, %c0_6], %5 {strides = array<i32>} : memref<8x4xf32, #tpu.memory_space<vmem>>, vector<8x4xf32>,
    return
  }
  func.func @transform_0(%arg0: i32) -> (i32, i32) {
    %c0_i32 = arith.constant 0 : i32
    %c0_i32_0 = arith.constant 0 : i32
    return %arg0, %c0_i32 : i32, i32
  }
  func.func @transform_1(%arg0: i32) -> (i32, i32) {
    %c0_i32 = arith.constant 0 : i32
    %c0_i32_0 = arith.constant 0 : i32
    %c0_i32_1 = arith.constant 0 : i32
    return %c0_i32, %c0_i32_0 : i32, i32
  }
  func.func @transform_2(%arg0: i32) -> (i32, i32) {
    %c0_i32 = arith.constant 0 : i32
    %c0_i32_0 = arith.constant 0 : i32
    %c0_i32_1 = arith.constant 0 : i32
    return %c0_i32, %c0_i32_0 : i32, i32
  }
  func.func @transform_3(%arg0: i32) -> (i32, i32) {
    %c0_i32 = arith.constant 0 : i32
    %c0_i32_0 = arith.constant 0 : i32
    return %arg0, %c0_i32 : i32, i32
  }
}

</mosaic_0001>

<llo_original>
// kernel: tpu_custom_call.1
$region0: #{tpu_custom_call.1}
  #allocation0 [shape = 'u32[]', space=smem, size = 0x4, offset = 0x4, fixed_abs, tag = 'smem constant byte address 0x4 - core index']
  #allocation1 [shape = 'u32[144,128]{1,0:T(1,128)}', space=vmem, size = 0x12000, scoped, tag = 'internal scratch']
  %s0 = inlined_call_operand.hbm [shape: f32[8,32], index: 0, kind: input, shape index: {}]
  %s1 = inlined_call_operand.hbm [shape: f32[4,32], index: 1, kind: input, shape index: {}]
  %s2 = inlined_call_operand.vmem [shape: f32[1,4], index: 2, kind: input, shape index: {}]
  %s3 = inlined_call_operand.vmem [shape: f32[8,4], index: 3, kind: output, shape index: {}]
  %s4 = sld [smem:[#allocation0]]
  $region30: #{tpu_custom_call.1} parent=0
    _
  %s6 = ssub.s32 1, %s4
  %s7 = scalar_select 0, %s6, %s4
  $region1: #{tpu_custom_call.1} parent=0
    #allocation2 [shape = 'u8[4096]{0}', space=vmem, size = 0x1000, scoped, tag = 'input window, operand 0, single buffered']
    #allocation3 [shape = 's32[1]{0}', space=sflag, size = 0x4, scoped, tag = 'scoped memory for tpu_custom_call.1']
    #allocation4 [shape = 'u8[2048]{0}', space=vmem, size = 0x800, scoped, tag = 'input window, operand 1, single buffered']
    #allocation5 [shape = 's32[1]{0}', space=sflag, size = 0x4, scoped, tag = 'scoped memory for tpu_custom_call.1']
    %8 = vsyncpa [#allocation3], 0
    %9 = vsyncpa [#allocation5], 0
    // Predicated region
    $region2: #{tpu_custom_call.1} parent=1 // pred_check
      _
    $region3: #{tpu_custom_call.1} parent=1 // pred_check_branch
      %11 = sbr.rel (0) target = $region5
    $region4: #{tpu_custom_call.1} parent=1 // pred_region
      %s13 = ssub.s32 128, 128
      %14 = vsyncadd [#allocation3], %s13
      %s16 = sshll.u32 [#allocation2], 4
      %s17 = int_to_ptr.vmem [resolvable:$true] %s16
      %19 = dma.hbm_to_vmem [thread:$0]  %s0, 128, %s17, [#allocation3]
    $region5: #{tpu_custom_call.1} parent=1 // pred_fallthru
      _
    // Predicated region
    $region6: #{tpu_custom_call.1} parent=1 // pred_check
      _
    $region7: #{tpu_custom_call.1} parent=1 // pred_check_branch
      %21 = sbr.rel (0) target = $region9
    $region8: #{tpu_custom_call.1} parent=1 // pred_region
      %s23 = ssub.s32 64, 64
      %24 = vsyncadd [#allocation5], %s23
      %s26 = sshll.u32 [#allocation4], 4
      %s27 = int_to_ptr.vmem [resolvable:$true] %s26
      %29 = dma.hbm_to_vmem [thread:$0]  %s1, 64, %s27, [#allocation5]
    $region9: #{tpu_custom_call.1} parent=1 // pred_fallthru
      _
    // Predicated region
    $region10: #{tpu_custom_call.1} parent=1 // pred_check
      _
    $region11: #{tpu_custom_call.1} parent=1 // pred_check_branch
      %31 = sbr.rel (0) target = $region13
    $region12: #{tpu_custom_call.1} parent=1 // pred_region
      _
    $region13: #{tpu_custom_call.1} parent=1 // pred_fallthru
      _
    // Predicated region
    $region14: #{tpu_custom_call.1} parent=1 // pred_check
      _
    $region15: #{tpu_custom_call.1} parent=1 // pred_check_branch
      %33 = sbr.rel (0) target = $region17
    $region16: #{tpu_custom_call.1} parent=1 // pred_region
      %34 = dma.done [#allocation3], 128
    $region17: #{tpu_custom_call.1} parent=1 // pred_fallthru
      _
    // Predicated region
    $region18: #{tpu_custom_call.1} parent=1 // pred_check
      _
    $region19: #{tpu_custom_call.1} parent=1 // pred_check_branch
      %36 = sbr.rel (0) target = $region21
    $region20: #{tpu_custom_call.1} parent=1 // pred_region
      %37 = dma.done [#allocation5], 64
    $region21: #{tpu_custom_call.1} parent=1 // pred_fallthru
      _
    %v38 = vld [vmem:[#allocation2] sm:$0xff]
    %v39 = vld [vmem:[#allocation4] sm:$0xf]
    %v40 = vld [vmem:[%s2] sm:$0x1]
    %v42 = vlaneseq
    %v43 = vshrl.u32 %v42, 7
    %v44 = vsub.s32 0, %v43
    %v45 = vrot.slane %v40, %v44
    %vm47 = vcmask 261120
    %v49 = vsel %vm47, %v38, 0
    %v52 = vsel %vm47, %v39, 0
    %54 = vmatprep.subr.mxu0 0.0
    %55 = vmatpush1.xpose.msra.mxu0 %v52
    %56 = vmatprep.subr.mxu0 0.0
    %57 = vmatpush1.xpose.msra.mxu0 0.0
    %58 = vmatprep.subr.mxu0 0.0
    %59 = vmatpush1.xpose.msra.mxu0 0.0
    %60 = vmatprep.subr.mxu0 0.0
    %61 = vmatpush1.xpose.msra.mxu0 0.0
    %62 = vmatprep.subr.mxu0 0.0
    %63 = vmatpush1.xpose.msra.mxu0 0.0
    %64 = vmatprep.subr.mxu0 0.0
    %65 = vmatpush1.xpose.msra.mxu0 0.0
    %66 = vmatprep.subr.mxu0 0.0
    %67 = vmatpush1.xpose.msra.mxu0 0.0
    %68 = vmatprep.subr.mxu0 0.0
    %69 = vmatpush1.xpose.msra.mxu0 0.0
    %70 = vmatprep.subr.mxu0 0.0
    %71 = vmatpush1.xpose.msra.mxu0 0.0
    %72 = vmatprep.subr.mxu0 0.0
    %73 = vmatpush1.xpose.msra.mxu0 0.0
    %74 = vmatprep.subr.mxu0 0.0
    %75 = vmatpush1.xpose.msra.mxu0 0.0
    %76 = vmatprep.subr.mxu0 0.0
    %77 = vmatpush1.xpose.msra.mxu0 0.0
    %78 = vmatprep.subr.mxu0 0.0
    %79 = vmatpush1.xpose.msra.mxu0 0.0
    %80 = vmatprep.subr.mxu0 0.0
    %81 = vmatpush1.xpose.msra.mxu0 0.0
    %82 = vmatprep.subr.mxu0 0.0
    %83 = vmatpush1.xpose.msra.mxu0 0.0
    %84 = vmatprep.subr.mxu0 0.0
    %85 = vmatpush1.xpose.msra.mxu0 0.0
    %86 = vmatprep.subr.mxu0 0.0
    %87 = vmatpush1.xpose.msra.mxu0 0.0
    %88 = vmatprep.subr.mxu0 0.0
    %89 = vmatpush1.xpose.msra.mxu0 0.0
    %90 = vmatprep.subr.mxu0 0.0
    %91 = vmatpush1.xpose.msra.mxu0 0.0
    %92 = vmatprep.subr.mxu0 0.0
    %93 = vmatpush1.xpose.msra.mxu0 0.0
    %94 = vmatprep.subr.mxu0 0.0
    %95 = vmatpush1.xpose.msra.mxu0 0.0
    %96 = vmatprep.subr.mxu0 0.0
    %97 = vmatpush1.xpose.msra.mxu0 0.0
    %98 = vmatprep.subr.mxu0 0.0
    %99 = vmatpush1.xpose.msra.mxu0 0.0
    %100 = vmatprep.subr.mxu0 0.0
    %101 = vmatpush1.xpose.msra.mxu0 0.0
    %102 = vmatprep.subr.mxu0 0.0
    %103 = vmatpush1.xpose.msra.mxu0 0.0
    %104 = vmatprep.subr.mxu0 0.0
    %105 = vmatpush1.xpose.msra.mxu0 0.0
    %106 = vmatprep.subr.mxu0 0.0
    %107 = vmatpush1.xpose.msra.mxu0 0.0
    %108 = vmatprep.subr.mxu0 0.0
    %109 = vmatpush1.xpose.msra.mxu0 0.0
    %110 = vmatprep.subr.mxu0 0.0
    %111 = vmatpush1.xpose.msra.mxu0 0.0
    %112 = vmatprep.subr.mxu0 0.0
    %113 = vmatpush1.xpose.msra.mxu0 0.0
    %114 = vmatprep.subr.mxu0 0.0
    %115 = vmatpush1.xpose.msra.mxu0 0.0
    %116 = vmatprep.subr.mxu0 0.0
    %117 = vmatpush1.xpose.msra.mxu0 0.0
    %118 = vmatprep.mubr.f32.mxu0 0.0
    %119 = vmatmul.mubr.f32.gmra.mrb[0].mxu0 %v49
    %v120 = vpop.f32.mrb[0].mxu0
    %v121 = vadd.f32 %v45, %v120
    %v122 = vpop.f32.mrb[0].mxu0
    %123 = vdwg.mxu0
    %vm124 = vcmask 31744
    %125 = vst.msk [vmem:[%s3] sm:$0xff] %vm124, %v121
    // Predicated region
    $region22: #{tpu_custom_call.1} parent=1 // pred_check
      _
    $region23: #{tpu_custom_call.1} parent=1 // pred_check_branch
      %127 = sbr.rel (0) target = $region25
    $region24: #{tpu_custom_call.1} parent=1 // pred_region
      _
    $region25: #{tpu_custom_call.1} parent=1 // pred_fallthru
      _
    // Predicated region
    $region26: #{tpu_custom_call.1} parent=1 // pred_check
      _
    $region27: #{tpu_custom_call.1} parent=1 // pred_check_branch
      %129 = sbr.rel (0) target = $region29
    $region28: #{tpu_custom_call.1} parent=1 // pred_region
      _
    $region29: #{tpu_custom_call.1} parent=1 // pred_fallthru
      _
    %130 = vsyncpa [#allocation3], 1
    %131 = vsyncpa [#allocation5], 1

</llo_original>
